<compile_context>
chip_gen: v5e
topology: v5e:2x2
jax: 0.10.0
libtpu: 0.0.40
codegen_flags: <defaults>
</compile_context>

<pallas_src>
import functools

import jax
import jax.numpy as jnp
from jax.experimental import pallas as pl
from jax.experimental.pallas import tpu as pltpu


# On v6e / v7x with production-size dims (input_dim=512, embed_dim=1024) set this to
# jnp.bfloat16 to hit the fast MXU path (activations are already f16-quantized, so
# there is precision headroom).  Kept at f32 here so the small-shape reference check
# holds at rtol=1e-3 on every TPU generation (v5e has no bf16 VPU path anyway).
MATMUL_INPUT_DTYPE = jnp.float32

LANE = 128


def _round_up(x, m):
    return (x + m - 1) // m * m


def _f16_quantize(x):
    """Bit-exact emulation of x.astype(f16).astype(f32) (round-to-nearest-even) for
    values in the f16 normal range, using only i32 ops (no Mosaic f16 needed)."""
    bits = pltpu.bitcast(x, jnp.int32)
    bias = 0x00000FFF + jnp.bitwise_and(jnp.right_shift(bits, 13), 1)
    bits = jnp.bitwise_and(bits + bias, jnp.int32(-8192))     # -8192 == 0xFFFFE000
    return pltpu.bitcast(bits, jnp.float32)


# ---------------------------------------------------------------- fused kernel ---

def _fused_kernel(idx_ref,                                    # SMEM (B*K,) i32 (prefetched)
                  base_ref,                                   # VMEM (B*N, D) f32
                  fcw_ref, fcb_ref,                           # (D, Ep), (1, Ep)
                  w0_ref, b0_ref,                             # (D, Hp), (1, Hp)  (BN folded)
                  w1_ref, b1_ref,                             # (Hp, Ep), (1, Ep)
                  o_ref,                                      # (B, Ep) f32
                  *, B, K):
    # ---- gather the top-k token rows (flat indices live in SMEM) ----
    rows = [base_ref[pl.ds(idx_ref[r], 1), :] for r in range(B * K)]
    x = jnp.concatenate(rows, axis=0)                         # (B*K, D) f32

    # ---- l2norm over the feature dim ----
    sumsq = jnp.sum(x * x, axis=-1, keepdims=True)
    x = x * jax.lax.rsqrt(sumsq + 1e-16)      # == x / (sqrt(sumsq) + 1e-8) to ~1e-9 rel.

    # ---- .half() quantization round-trip ----
    x = _f16_quantize(x)

    cd = fcw_ref.dtype
    xm = x.astype(cd)

    # ---- fc branch: Linear(D, E) ----
    y = jnp.dot(xm, fcw_ref[...], preferred_element_type=jnp.float32) + fcb_ref[...]

    # ---- mlp branch: Linear(D, H) (eval BatchNorm folded in) -> ReLU -> Linear(H, E)
    # TODO(synk): training-mode BatchNorm (batch statistics over B*K rows) not implemented.
    h = jnp.dot(xm, w0_ref[...], preferred_element_type=jnp.float32) + b0_ref[...]
    h = jnp.maximum(h, 0.0)
    m = jnp.dot(h.astype(cd), w1_ref[...], preferred_element_type=jnp.float32) + b1_ref[...]

    f = m + y                                                 # (B*K, Ep)

    # ---- maxk_pool1d_var(dim=1, k=1, lengths == K)  ==  max over the K tokens ----
    parts = [jnp.max(f[b * K:(b + 1) * K, :], axis=0, keepdims=True) for b in range(B)]
    o_ref[...] = jnp.concatenate(parts, axis=0)               # (B, Ep)


# -------------------------------------------------------------------- forward ---

@functools.partial(jax.jit, static_argnames=("ratio",))
def visual_embedding_forward(base_features, atten, params, ratio=0.3):
    fcw, fcb, w0, b0, g0, beta0, m0, v0, w1, b1 = params
    B, N, D = base_features.shape
    L = atten.shape[1]
    # Guard k >= 1 (topk(0) / max over an empty token axis would be undefined).
    k = max(1, int((L - 1) * ratio))

    # atten[torch.arange(bs), :, 0] = -1 ; topk over attention row 0.
    # NOTE: assumes attention scores are >= -1 so column 0 is never selected.
    atten = atten.at[:, :, 0].set(-1.0)
    _, topk_idx = jax.lax.top_k(atten[:, 0], k)               # (B, k)
    flat_idx = (jnp.arange(B, dtype=jnp.int32)[:, None] * N
                + topk_idx.astype(jnp.int32)).reshape(B * k)  # rows of (B*N, D)

    # Fold eval-mode BatchNorm1d into the first MLP Linear (numerically identical).
    bn_scale = g0 * jax.lax.rsqrt(v0 + 1e-5)
    w0f = w0 * bn_scale
    b0f = (b0 - m0) * bn_scale + beta0

    # Zero-pad hidden/output feature dims to multiples of 128 so matmul RHS and the
    # output store are lane-dense; padded columns contribute exact zeros and are
    # sliced away below.  (In production, pre-pad the params once outside forward.)
    E = fcw.shape[1]
    H = w0.shape[1]
    Ep = _round_up(E, LANE)
    Hp = _round_up(H, LANE)
    cd = MATMUL_INPUT_DTYPE
    fcw_p = jnp.pad(fcw, ((0, 0), (0, Ep - E))).astype(cd)
    fcb_p = jnp.pad(fcb, ((0, 0), (0, Ep - E)))
    w0_p = jnp.pad(w0f, ((0, 0), (0, Hp - H))).astype(cd)
    b0_p = jnp.pad(b0f, ((0, 0), (0, Hp - H)))
    w1_p = jnp.pad(w1, ((0, Hp - H), (0, Ep - E))).astype(cd)
    b1_p = jnp.pad(b1, ((0, 0), (0, Ep - E)))

    base_flat = base_features.astype(jnp.float32).reshape(B * N, D)

    def full(shape):
        return pl.BlockSpec(shape, lambda i, *_: (0,) * len(shape))

    out_p = pl.pallas_call(
        functools.partial(_fused_kernel, B=B, K=k),
        out_shape=jax.ShapeDtypeStruct((B, Ep), jnp.float32),
        grid_spec=pltpu.PrefetchScalarGridSpec(
            num_scalar_prefetch=1,
            grid=(1,),   # single step: one (B*K, D) LHS instead of B tiny matmuls.
                         # TODO(synk): on v7x, split E (or the B*K rows) over a 2-wide
                         # "parallel" grid axis to feed both TensorCores.
            in_specs=[
                full((B * N, D)),                   # flattened token table
                full((D, Ep)), full((1, Ep)),       # fc
                full((D, Hp)), full((1, Hp)),       # mlp layer0 (BN folded)
                full((Hp, Ep)), full((1, Ep)),      # mlp layer1
            ],
            out_specs=full((B, Ep)),
        ),
        compiler_params=pltpu.CompilerParams(
            dimension_semantics=("arbitrary",),
            vmem_limit_bytes=32 * 1024 * 1024),
    )(flat_idx, base_flat, fcw_p, fcb_p, w0_p, b0_p, w1_p, b1_p)

    # NOTE: self.linear of the PyTorch module is unused in forward -> omitted.
    return out_p[:, :E].astype(jnp.float32)


# ------------------------------------------------------------------ reference ---

def reference_forward(base_features, atten, params, ratio=0.3):
    fcw, fcb, w0, b0, g0, beta0, m0, v0, w1, b1 = params
    B, N, D = base_features.shape
    L = atten.shape[1]
    k = max(1, int((L - 1) * ratio))

    atten = atten.at[:, :, 0].set(-1.0)
    _, topk_idx = jax.lax.top_k(atten[:, 0], k)
    x = jnp.take_along_axis(base_features, topk_idx[:, :, None], axis=1)
    norm = jnp.sqrt(jnp.sum(x * x, axis=-1, keepdims=True)) + 1e-8
    x = (x / norm).astype(jnp.float16).astype(jnp.float32)

    y = x @ fcw + fcb
    h = x @ w0 + b0
    h = (h - m0) * jax.lax.rsqrt(v0 + 1e-5) * g0 + beta0
    h = jnp.maximum(h, 0.0)
    m = h @ w1 + b1
    f = m + y
    return jnp.max(f, axis=1)


# ------------------------------------------------------------------------ main --

if __name__ == "__main__":
    # small shapes consistent with the module: input_dim=32, embed_dim=64
    B, N, D, E = 2, 16, 32, 64
    H = E // 2
    ratio = 0.3

    key = jax.random.PRNGKey(0)
    ks = jax.random.split(key, 8)
    scale = 0.05

    # parameters (PyTorch Linear stores (out, in); we store the transpose (in, out))
    fcw = jax.random.normal(ks[0], (D, E), jnp.float32) * scale
    fcb = jax.random.normal(ks[1], (1, E), jnp.float32) * scale
    w0 = jax.random.normal(ks[2], (D, H), jnp.float32) * scale
    b0 = jax.random.normal(ks[3], (1, H), jnp.float32) * scale
    g0 = jnp.ones((1, H), jnp.float32)          # BatchNorm1d default init
    beta0 = jnp.zeros((1, H), jnp.float32)
    m0 = jnp.zeros((1, H), jnp.float32)         # running_mean
    v0 = jnp.ones((1, H), jnp.float32)          # running_var
    w1 = jax.random.normal(ks[4], (H, E), jnp.float32) * scale
    b1 = jax.random.normal(ks[5], (1, E), jnp.float32) * scale
    params = (fcw, fcb, w0, b0, g0, beta0, m0, v0, w1, b1)

    # inputs
    base_features = jax.random.normal(ks[6], (B, N, D), jnp.float32)
    atten = jax.random.uniform(ks[7], (B, N, N), jnp.float32)

    out = visual_embedding_forward(base_features, atten, params, ratio=ratio)
    out = jax.block_until_ready(out)

    ref = reference_forward(base_features, atten, params, ratio=ratio)
    assert out.shape == (B, E) and out.dtype == jnp.float32
    assert jnp.allclose(out, ref, rtol=1e-3, atol=1e-3), "mismatch vs reference"

    print("KERNEL_OK")
</pallas_src>

<mosaic_0001>
module attributes {stable_mosaic.version = 11 : i64} {
  func.func @_fused_kernel(%arg0: i32, %arg1: memref<8xi32, #tpu.memory_space<smem>>, %arg2: memref<32x32xf32, #tpu.memory_space<vmem>>, %arg3: memref<32x128xf32, #tpu.memory_space<vmem>>, %arg4: memref<1x128xf32, #tpu.memory_space<vmem>>, %arg5: memref<32x128xf32, #tpu.memory_space<vmem>>, %arg6: memref<1x128xf32, #tpu.memory_space<vmem>>, %arg7: memref<128x128xf32, #tpu.memory_space<vmem>>, %arg8: memref<1x128xf32, #tpu.memory_space<vmem>>, %arg9: memref<2x128xf32, #tpu.memory_space<vmem>>) attributes {dimension_semantics = [#tpu.dimension_semantics<arbitrary>], iteration_bounds = array<i64: 1>, scalar_prefetch = 1 : i64, scratch_operands = 0 : i64, tpu.core_type = #tpu.core_type<tc>, window_params = [{pipeline_mode = #tpu.pipeline_mode<synchronous>, transform_indices = @transform_0, window_bounds = array<i64: 32, 32>}, {pipeline_mode = #tpu.pipeline_mode<synchronous>, transform_indices = @transform_1, window_bounds = array<i64: 32, 128>}, {pipeline_mode = #tpu.pipeline_mode<synchronous>, transform_indices = @transform_2, window_bounds = array<i64: 1, 128>}, {pipeline_mode = #tpu.pipeline_mode<synchronous>, transform_indices = @transform_3, window_bounds = array<i64: 32, 128>}, {pipeline_mode = #tpu.pipeline_mode<synchronous>, transform_indices = @transform_4, window_bounds = array<i64: 1, 128>}, {pipeline_mode = #tpu.pipeline_mode<synchronous>, transform_indices = @transform_5, window_bounds = array<i64: 128, 128>}, {pipeline_mode = #tpu.pipeline_mode<synchronous>, transform_indices = @transform_6, window_bounds = array<i64: 1, 128>}, {pipeline_mode = #tpu.pipeline_mode<synchronous>, transform_indices = @transform_7, window_bounds = array<i64: 2, 128>}]} {
    %c0 = arith.constant 0 : index
    %0 = memref.load %arg1[%c0] : memref<8xi32, #tpu.memory_space<smem>>
    %1 = arith.index_cast %0 : i32 to index
    %c0_0 = arith.constant 0 : index
    %2 = vector.load %arg2[%1, %c0_0] : memref<32x32xf32, #tpu.memory_space<vmem>>, vector<1x32xf32>
    %c1 = arith.constant 1 : index
    %3 = memref.load %arg1[%c1] : memref<8xi32, #tpu.memory_space<smem>>
    %4 = arith.index_cast %3 : i32 to index
    %c0_1 = arith.constant 0 : index
    %5 = vector.load %arg2[%4, %c0_1] : memref<32x32xf32, #tpu.memory_space<vmem>>, vector<1x32xf32>
    %c2 = arith.constant 2 : index
    %6 = memref.load %arg1[%c2] : memref<8xi32, #tpu.memory_space<smem>>
    %7 = arith.index_cast %6 : i32 to index
    %c0_2 = arith.constant 0 : index
    %8 = vector.load %arg2[%7, %c0_2] : memref<32x32xf32, #tpu.memory_space<vmem>>, vector<1x32xf32>
    %c3 = arith.constant 3 : index
    %9 = memref.load %arg1[%c3] : memref<8xi32, #tpu.memory_space<smem>>
    %10 = arith.index_cast %9 : i32 to index
    %c0_3 = arith.constant 0 : index
    %11 = vector.load %arg2[%10, %c0_3] : memref<32x32xf32, #tpu.memory_space<vmem>>, vector<1x32xf32>
    %c4 = arith.constant 4 : index
    %12 = memref.load %arg1[%c4] : memref<8xi32, #tpu.memory_space<smem>>
    %13 = arith.index_cast %12 : i32 to index
    %c0_4 = arith.constant 0 : index
    %14 = vector.load %arg2[%13, %c0_4] : memref<32x32xf32, #tpu.memory_space<vmem>>, vector<1x32xf32>
    %c5 = arith.constant 5 : index
    %15 = memref.load %arg1[%c5] : memref<8xi32, #tpu.memory_space<smem>>
    %16 = arith.index_cast %15 : i32 to index
    %c0_5 = arith.constant 0 : index
    %17 = vector.load %arg2[%16, %c0_5] : memref<32x32xf32, #tpu.memory_space<vmem>>, vector<1x32xf32>
    %c6 = arith.constant 6 : index
    %18 = memref.load %arg1[%c6] : memref<8xi32, #tpu.memory_space<smem>>
    %19 = arith.index_cast %18 : i32 to index
    %c0_6 = arith.constant 0 : index
    %20 = vector.load %arg2[%19, %c0_6] : memref<32x32xf32, #tpu.memory_space<vmem>>, vector<1x32xf32>
    %c7 = arith.constant 7 : index
    %21 = memref.load %arg1[%c7] : memref<8xi32, #tpu.memory_space<smem>>
    %22 = arith.index_cast %21 : i32 to index
    %c0_7 = arith.constant 0 : index
    %23 = vector.load %arg2[%22, %c0_7] : memref<32x32xf32, #tpu.memory_space<vmem>>, vector<1x32xf32>
    %24 = tpu.concatenate %2, %5, %8, %11, %14, %17, %20, %23 in 0 : vector<1x32xf32>, vector<1x32xf32>, vector<1x32xf32>, vector<1x32xf32>, vector<1x32xf32>, vector<1x32xf32>, vector<1x32xf32>, vector<1x32xf32> -> vector<8x32xf32>
    %25 = arith.mulf %24, %24 : vector<8x32xf32>
    %cst = arith.constant dense<0.000000e+00> : vector<8xf32>
    %26 = vector.multi_reduction <add>, %25, %cst [1] : vector<8x32xf32> to vector<8xf32>
    %27 = vector.shape_cast %26 : vector<8xf32> to vector<8x1xf32>
    %cst_8 = arith.constant 1.000000e-16 : f32
    %28 = vector.broadcast %cst_8 : f32 to vector<8x1xf32>
    %29 = arith.addf %27, %28 : vector<8x1xf32>
    %30 = math.rsqrt %29 : vector<8x1xf32>
    %31 = vector.broadcast %30 : vector<8x1xf32> to vector<8x32xf32>
    %32 = arith.mulf %24, %31 : vector<8x32xf32>
    %33 = tpu.bitcast %32 : vector<8x32xf32> -> vector<8x32xi32>
    %c13_i32 = arith.constant 13 : i32
    %34 = vector.broadcast %c13_i32 : i32 to vector<8x32xi32>
    %35 = arith.shrsi %33, %34 : vector<8x32xi32>
    %c1_i32 = arith.constant 1 : i32
    %36 = vector.broadcast %c1_i32 : i32 to vector<8x32xi32>
    %37 = arith.andi %35, %36 : vector<8x32xi32>
    %c4095_i32 = arith.constant 4095 : i32
    %38 = vector.broadcast %c4095_i32 : i32 to vector<8x32xi32>
    %39 = arith.addi %38, %37 : vector<8x32xi32>
    %40 = arith.addi %33, %39 : vector<8x32xi32>
    %c-8192_i32 = arith.constant -8192 : i32
    %41 = vector.broadcast %c-8192_i32 : i32 to vector<8x32xi32>
    %42 = arith.andi %40, %41 : vector<8x32xi32>
    %43 = tpu.bitcast %42 : vector<8x32xi32> -> vector<8x32xf32>
    %c0_9 = arith.constant 0 : index
    %c0_10 = arith.constant 0 : index
    %44 = vector.load %arg3[%c0_9, %c0_10] : memref<32x128xf32, #tpu.memory_space<vmem>>, vector<32x128xf32>
    %cst_11 = arith.constant dense<0.000000e+00> : vector<8x128xf32>
    %45 = tpu.matmul %43, %44, %cst_11 {dimension_numbers = #tpu.dot_dimension_numbers<[1], [0], [0], [1], [0, 0, 1, 1], [], []>} : vector<8x32xf32>, vector<32x128xf32>, vector<8x128xf32> -> vector<8x128xf32>
    %c0_12 = arith.constant 0 : index
    %c0_13 = arith.constant 0 : index
    %46 = vector.load %arg4[%c0_12, %c0_13] : memref<1x128xf32, #tpu.memory_space<vmem>>, vector<1x128xf32>
    %47 = vector.broadcast %46 : vector<1x128xf32> to vector<8x128xf32>
    %48 = arith.addf %45, %47 : vector<8x128xf32>
    %c0_14 = arith.constant 0 : index
    %c0_15 = arith.constant 0 : index
    %49 = vector.load %arg5[%c0_14, %c0_15] : memref<32x128xf32, #tpu.memory_space<vmem>>, vector<32x128xf32>
    %cst_16 = arith.constant dense<0.000000e+00> : vector<8x128xf32>
    %50 = tpu.matmul %43, %49, %cst_16 {dimension_numbers = #tpu.dot_dimension_numbers<[1], [0], [0], [1], [0, 0, 1, 1], [], []>} : vector<8x32xf32>, vector<32x128xf32>, vector<8x128xf32> -> vector<8x128xf32>
    %c0_17 = arith.constant 0 : index
    %c0_18 = arith.constant 0 : index
    %51 = vector.load %arg6[%c0_17, %c0_18] : memref<1x128xf32, #tpu.memory_space<vmem>>, vector<1x128xf32>
    %52 = vector.broadcast %51 : vector<1x128xf32> to vector<8x128xf32>
    %53 = arith.addf %50, %52 : vector<8x128xf32>
    %cst_19 = arith.constant 0.000000e+00 : f32
    %54 = vector.broadcast %cst_19 : f32 to vector<8x128xf32>
    %55 = arith.maximumf %53, %54 : vector<8x128xf32>
    %c0_20 = arith.constant 0 : index
    %c0_21 = arith.constant 0 : index
    %56 = vector.load %arg7[%c0_20, %c0_21] : memref<128x128xf32, #tpu.memory_space<vmem>>, vector<128x128xf32>
    %cst_22 = arith.constant dense<0.000000e+00> : vector<8x128xf32>
    %57 = tpu.matmul %55, %56, %cst_22 {dimension_numbers = #tpu.dot_dimension_numbers<[1], [0], [0], [1], [0, 0, 1, 1], [], []>} : vector<8x128xf32>, vector<128x128xf32>, vector<8x128xf32> -> vector<8x128xf32>
    %c0_23 = arith.constant 0 : index
    %c0_24 = arith.constant 0 : index
    %58 = vector.load %arg8[%c0_23, %c0_24] : memref<1x128xf32, #tpu.memory_space<vmem>>, vector<1x128xf32>
    %59 = vector.broadcast %58 : vector<1x128xf32> to vector<8x128xf32>
    %60 = arith.addf %57, %59 : vector<8x128xf32>
    %61 = arith.addf %60, %48 : vector<8x128xf32>
    %62 = vector.extract_strided_slice %61 {offsets = [0, 0], sizes = [4, 128], strides = [1, 1]} : vector<8x128xf32> to vector<4x128xf32>
    %cst_25 = arith.constant dense<0xFF800000> : vector<128xf32>
    %63 = vector.multi_reduction <maximumf>, %62, %cst_25 [0] : vector<4x128xf32> to vector<128xf32>
    %64 = vector.shape_cast %63 : vector<128xf32> to vector<1x128xf32>
    %65 = vector.extract_strided_slice %61 {offsets = [4, 0], sizes = [4, 128], strides = [1, 1]} : vector<8x128xf32> to vector<4x128xf32>
    %cst_26 = arith.constant dense<0xFF800000> : vector<128xf32>
    %66 = vector.multi_reduction <maximumf>, %65, %cst_26 [0] : vector<4x128xf32> to vector<128xf32>
    %67 = vector.shape_cast %66 : vector<128xf32> to vector<1x128xf32>
    %68 = tpu.concatenate %64, %67 in 0 : vector<1x128xf32>, vector<1x128xf32> -> vector<2x128xf32>
    %c0_27 = arith.constant 0 : index
    %c0_28 = arith.constant 0 : index
    %69 = vector.load %arg9[%c0_27, %c0_28] : memref<2x128xf32, #tpu.memory_space<vmem>>, vector<2x128xf32>
    tpu.vector_store %arg9[%c0_27, %c0_28], %68 {strides = array<i32>} : memref<2x128xf32, #tpu.memory_space<vmem>>, vector<2x128xf32>,
    return
  }
  func.func @transform_0(%arg0: i32, %arg1: memref<8xi32, #tpu.memory_space<smem>>) -> (i32, i32) {
    %c0_i32 = arith.constant 0 : i32
    %c0_i32_0 = arith.constant 0 : i32
    %c0_i32_1 = arith.constant 0 : i32
    return %c0_i32, %c0_i32_0 : i32, i32
  }
  func.func @transform_1(%arg0: i32, %arg1: memref<8xi32, #tpu.memory_space<smem>>) -> (i32, i32) {
    %c0_i32 = arith.constant 0 : i32
    %c0_i32_0 = arith.constant 0 : i32
    %c0_i32_1 = arith.constant 0 : i32
    return %c0_i32, %c0_i32_0 : i32, i32
  }
  func.func @transform_2(%arg0: i32, %arg1: memref<8xi32, #tpu.memory_space<smem>>) -> (i32, i32) {
    %c0_i32 = arith.constant 0 : i32
    %c0_i32_0 = arith.constant 0 : i32
    %c0_i32_1 = arith.constant 0 : i32
    return %c0_i32, %c0_i32_0 : i32, i32
  }
  func.func @transform_3(%arg0: i32, %arg1: memref<8xi32, #tpu.memory_space<smem>>) -> (i32, i32) {
    %c0_i32 = arith.constant 0 : i32
    %c0_i32_0 = arith.constant 0 : i32
    %c0_i32_1 = arith.constant 0 : i32
    return %c0_i32, %c0_i32_0 : i32, i32
  }
  func.func @transform_4(%arg0: i32, %arg1: memref<8xi32, #tpu.memory_space<smem>>) -> (i32, i32) {
    %c0_i32 = arith.constant 0 : i32
    %c0_i32_0 = arith.constant 0 : i32
    %c0_i32_1 = arith.constant 0 : i32
    return %c0_i32, %c0_i32_0 : i32, i32
  }
  func.func @transform_5(%arg0: i32, %arg1: memref<8xi32, #tpu.memory_space<smem>>) -> (i32, i32) {
    %c0_i32 = arith.constant 0 : i32
    %c0_i32_0 = arith.constant 0 : i32
    %c0_i32_1 = arith.constant 0 : i32
    return %c0_i32, %c0_i32_0 : i32, i32
  }
  func.func @transform_6(%arg0: i32, %arg1: memref<8xi32, #tpu.memory_space<smem>>) -> (i32, i32) {
    %c0_i32 = arith.constant 0 : i32
    %c0_i32_0 = arith.constant 0 : i32
    %c0_i32_1 = arith.constant 0 : i32
    return %c0_i32, %c0_i32_0 : i32, i32
  }
  func.func @transform_7(%arg0: i32, %arg1: memref<8xi32, #tpu.memory_space<smem>>) -> (i32, i32) {
    %c0_i32 = arith.constant 0 : i32
    %c0_i32_0 = arith.constant 0 : i32
    %c0_i32_1 = arith.constant 0 : i32
    return %c0_i32, %c0_i32_0 : i32, i32
  }
}

</mosaic_0001>

<llo_original>
// kernel: visual_embedding_forward.1
$region0: #{visual_embedding_forward.1}
  #allocation0 [shape = 'u32[]', space=smem, size = 0x4, offset = 0x4, fixed_abs, tag = 'smem constant byte address 0x4 - core index']
  #allocation1 [shape = 'u32[72,128]{1,0:T(1,128)}', space=vmem, size = 0x9000, scoped, tag = 'internal scratch']
  #allocation2 [shape = 's32[1]{0}', space=sflag, size = 0x4, scoped, tag = 'scoped memory for visual_embedding_forward.1']
  #allocation3 [shape = 'u8[512]{0}', space=smem, size = 0x200, scoped, tag = 'prefetched SMEM operand 0']
  %s0 = inlined_call_operand.vmem [shape: s32[8], index: 0, kind: input, shape index: {}]
  %s1 = inlined_call_operand.vmem [shape: f32[32,32], index: 1, kind: input, shape index: {}]
  %s2 = inlined_call_operand.vmem [shape: f32[32,128], index: 2, kind: input, shape index: {}]
  %s3 = inlined_call_operand.vmem [shape: f32[1,128], index: 3, kind: input, shape index: {}]
  %s4 = inlined_call_operand.vmem [shape: f32[32,128], index: 4, kind: input, shape index: {}]
  %s5 = inlined_call_operand.vmem [shape: f32[1,128], index: 5, kind: input, shape index: {}]
  %s6 = inlined_call_operand.vmem [shape: f32[128,128], index: 6, kind: input, shape index: {}]
  %s7 = inlined_call_operand.vmem [shape: f32[1,128], index: 7, kind: input, shape index: {}]
  %s8 = inlined_call_operand.hbm [shape: f32[2,128], index: 8, kind: output, shape index: {}]
  %s9 = sld [smem:[#allocation0]]
  $region38: #{visual_embedding_forward.1} parent=0
    _
  %s11 = ssub.s32 1, %s9
  %s12 = scalar_select 0, %s11, %s9
  %s14 = sshll.u32 %s0, 4
  %s15 = int_to_ptr.vmem [resolvable:$true] %s14
  %17 = dma.vmem_to_smem %s15, 16, [#allocation3], [#allocation2]
  %19 = dma.done [#allocation2], 16
  %20 = sfence
  $region1: #{visual_embedding_forward.1} parent=0
    #allocation4 [shape = 'u8[1024]{0}', space=vmem, size = 0x400, scoped, tag = 'output window, operand 0, single buffered']
    #allocation5 [shape = 's32[1]{0}', space=sflag, size = 0x4, scoped, tag = 'scoped memory for visual_embedding_forward.1']
    %21 = vsyncpa [#allocation5], 0
    // Predicated region
    $region2: #{visual_embedding_forward.1} parent=1 // pred_check
      _
    $region3: #{visual_embedding_forward.1} parent=1 // pred_check_branch
      %23 = sbr.rel (0) target = $region5
    $region4: #{visual_embedding_forward.1} parent=1 // pred_region
      _
    $region5: #{visual_embedding_forward.1} parent=1 // pred_fallthru
      _
    // Predicated region
    $region6: #{visual_embedding_forward.1} parent=1 // pred_check
      _
    $region7: #{visual_embedding_forward.1} parent=1 // pred_check_branch
      %25 = sbr.rel (0) target = $region9
    $region8: #{visual_embedding_forward.1} parent=1 // pred_region
      _
    $region9: #{visual_embedding_forward.1} parent=1 // pred_fallthru
      _
    // Predicated region
    $region10: #{visual_embedding_forward.1} parent=1 // pred_check
      _
    $region11: #{visual_embedding_forward.1} parent=1 // pred_check_branch
      %27 = sbr.rel (0) target = $region13
    $region12: #{visual_embedding_forward.1} parent=1 // pred_region
      _
    $region13: #{visual_embedding_forward.1} parent=1 // pred_fallthru
      _
    // Predicated region
    $region14: #{visual_embedding_forward.1} parent=1 // pred_check
      _
    $region15: #{visual_embedding_forward.1} parent=1 // pred_check_branch
      %29 = sbr.rel (0) target = $region17
    $region16: #{visual_embedding_forward.1} parent=1 // pred_region
      _
    $region17: #{visual_embedding_forward.1} parent=1 // pred_fallthru
      _
    // Predicated region
    $region18: #{visual_embedding_forward.1} parent=1 // pred_check
      _
    $region19: #{visual_embedding_forward.1} parent=1 // pred_check_branch
      %31 = sbr.rel (0) target = $region21
    $region20: #{visual_embedding_forward.1} parent=1 // pred_region
      _
    $region21: #{visual_embedding_forward.1} parent=1 // pred_fallthru
      _
    // Predicated region
    $region22: #{visual_embedding_forward.1} parent=1 // pred_check
      _
    $region23: #{visual_embedding_forward.1} parent=1 // pred_check_branch
      %33 = sbr.rel (0) target = $region25
    $region24: #{visual_embedding_forward.1} parent=1 // pred_region
      _
    $region25: #{visual_embedding_forward.1} parent=1 // pred_fallthru
      _
    // Predicated region
    $region26: #{visual_embedding_forward.1} parent=1 // pred_check
      _
    $region27: #{visual_embedding_forward.1} parent=1 // pred_check_branch
      %35 = sbr.rel (0) target = $region29
    $region28: #{visual_embedding_forward.1} parent=1 // pred_region
      _
    $region29: #{visual_embedding_forward.1} parent=1 // pred_fallthru
      _
    %s36 = sld [smem:[#allocation3]]
    %s37 = scalar_lea.vmem %s1, %s36
    %v38 = vld [vmem:[%s37] sm:$0x1]
    %s39 = sld [smem:[#allocation3 + $0x1]]
    %s40 = scalar_lea.vmem %s1, %s39
    %v41 = vld [vmem:[%s40] sm:$0x1]
    %s42 = sld [smem:[#allocation3 + $0x2]]
    %s43 = scalar_lea.vmem %s1, %s42
    %v44 = vld [vmem:[%s43] sm:$0x1]
    %s45 = sld [smem:[#allocation3 + $0x3]]
    %s46 = scalar_lea.vmem %s1, %s45
    %v47 = vld [vmem:[%s46] sm:$0x1]
    %s48 = sld [smem:[#allocation3 + $0x4]]
    %s49 = scalar_lea.vmem %s1, %s48
    %v50 = vld [vmem:[%s49] sm:$0x1]
    %s51 = sld [smem:[#allocation3 + $0x5]]
    %s52 = scalar_lea.vmem %s1, %s51
    %v53 = vld [vmem:[%s52] sm:$0x1]
    %s54 = sld [smem:[#allocation3 + $0x6]]
    %s55 = scalar_lea.vmem %s1, %s54
    %v56 = vld [vmem:[%s55] sm:$0x1]
    %s57 = sld [smem:[#allocation3 + $0x7]]
    %s58 = scalar_lea.vmem %s1, %s57
    %v59 = vld [vmem:[%s58] sm:$0x1]
    %v61 = vrot.slane %v41, 7
    %v64 = vrot.slane %v44, 6
    %v67 = vrot.slane %v47, 5
    %v70 = vrot.slane %v50, 4
    %v73 = vrot.slane %v53, 3
    %v76 = vrot.slane %v56, 2
    %v79 = vrot.slane %v59, 1
    %vm81 = vcmask 1040384
    %v82 = vsel %vm81, %v38, %v61
    %vm83 = vcmask 1041408
    %v84 = vsel %vm83, %v82, %v64
    %vm85 = vcmask 1042432
    %v86 = vsel %vm85, %v84, %v67
    %vm87 = vcmask 1043456
    %v88 = vsel %vm87, %v86, %v70
    %vm89 = vcmask 1044480
    %v90 = vsel %vm89, %v88, %v73
    %vm91 = vcmask 1045504
    %v92 = vsel %vm91, %v90, %v76
    %vm93 = vcmask 1046528
    %v94 = vsel %vm93, %v92, %v79
    %v95 = vmul.f32 %v94, %v94
    %vm96 = vcmask 261120
    %v97 = vsel %vm96, %v95, 0.0
    %98 = vadd.xlane.f32.xlu0 %v97
    %v99 = vpop.xlane.xlu0 %98
    %v100 = vadd.f32 %v99, 1e-16
    %v101 = vrsqrt.pop %v100
    %v102 = vmul.f32 %v101, %v100
    %v103 = vmul.f32 %v102, %v101
    %v104 = vmul.f32 0.5, %v103
    %v105 = vsub.f32 1.5, %v104
    %v106 = vmul.f32 %v101, %v105
    %vm107 = vweird.f32 %v100
    %vm108 = vweird.f32 %v101
    %vm109 = vmor %vm107, %vm108
    %v110 = vsel %vm109, %v101, %v106
    %v111 = vmul.f32 %v94, %v110
    %v113 = vshra.s32 %v111, 13
    %v114 = vand.u32 %v113, 1
    %v115 = vadd.s32 %v114, 4095
    %v116 = vadd.s32 %v111, %v115
    %v117 = vand.u32 %v116, 4294959104
    %v118 = vld [vmem:[%s2] sm:$0xff]
    %v119 = vld [vmem:[%s2 + $0x8] sm:$0xff]
    %v120 = vld [vmem:[%s2 + $0x10] sm:$0xff]
    %v121 = vld [vmem:[%s2 + $0x18] sm:$0xff]
    %v122 = vld [vmem:[%s3] sm:$0x1]
    %v124 = vperm.slane %v122, 0
    %v126 = vsel %vm96, %v117, 0
    %128 = vmatpush.msra.mxu0 0.0
    %129 = vmatpush.msra.mxu0 0.0
    %130 = vmatpush.msra.mxu0 0.0
    %131 = vmatpush.msra.mxu0 0.0
    %132 = vmatpush.msra.mxu0 0.0
    %133 = vmatpush.msra.mxu0 0.0
    %134 = vmatpush.msra.mxu0 0.0
    %135 = vmatpush.msra.mxu0 0.0
    %136 = vmatpush.msra.mxu0 0.0
    %137 = vmatpush.msra.mxu0 0.0
    %138 = vmatpush.msra.mxu0 0.0
    %139 = vmatpush.msra.mxu0 0.0
    %140 = vmatpush.msra.mxu0 %v121
    %141 = vmatpush.msra.mxu0 %v120
    %142 = vmatpush.msra.mxu0 %v119
    %143 = vmatpush.msra.mxu0 %v118
    %144 = vmatmul.f32.gmra.mxu0 %v126
    %v145 = vpop.f32.mrf.mxu0
    %v146 = vadd.f32 %v124, %v145
    %147 = vdwg.mxu0
    %v148 = vld [vmem:[%s4] sm:$0xff]
    %v149 = vld [vmem:[%s4 + $0x8] sm:$0xff]
    %v150 = vld [vmem:[%s4 + $0x10] sm:$0xff]
    %v151 = vld [vmem:[%s4 + $0x18] sm:$0xff]
    %v152 = vld [vmem:[%s5] sm:$0x1]
    %v154 = vperm.slane %v152, 0
    %156 = vmatpush.msra.mxu0 0.0
    %157 = vmatpush.msra.mxu0 0.0
    %158 = vmatpush.msra.mxu0 0.0
    %159 = vmatpush.msra.mxu0 0.0
    %160 = vmatpush.msra.mxu0 0.0
    %161 = vmatpush.msra.mxu0 0.0
    %162 = vmatpush.msra.mxu0 0.0
    %163 = vmatpush.msra.mxu0 0.0
    %164 = vmatpush.msra.mxu0 0.0
    %165 = vmatpush.msra.mxu0 0.0
    %166 = vmatpush.msra.mxu0 0.0
    %167 = vmatpush.msra.mxu0 0.0
    %168 = vmatpush.msra.mxu0 %v151
    %169 = vmatpush.msra.mxu0 %v150
    %170 = vmatpush.msra.mxu0 %v149
    %171 = vmatpush.msra.mxu0 %v148
    %172 = vmatmul.f32.gmra.mxu0 %v126
    %v173 = vpop.f32.mrf.mxu0
    %v174 = vadd.f32 %v154, %v173
    %175 = vdwg.mxu0
    %v176 = vmax.f32 %v174, 0.0
    %v177 = vld [vmem:[%s6] sm:$0xff]
    %v178 = vld [vmem:[%s6 + $0x8] sm:$0xff]
    %v179 = vld [vmem:[%s6 + $0x10] sm:$0xff]
    %v180 = vld [vmem:[%s6 + $0x18] sm:$0xff]
    %v181 = vld [vmem:[%s6 + $0x20] sm:$0xff]
    %v182 = vld [vmem:[%s6 + $0x28] sm:$0xff]
    %v183 = vld [vmem:[%s6 + $0x30] sm:$0xff]
    %v184 = vld [vmem:[%s6 + $0x38] sm:$0xff]
    %v185 = vld [vmem:[%s6 + $0x40] sm:$0xff]
    %v186 = vld [vmem:[%s6 + $0x48] sm:$0xff]
    %v187 = vld [vmem:[%s6 + $0x50] sm:$0xff]
    %v188 = vld [vmem:[%s6 + $0x58] sm:$0xff]
    %v189 = vld [vmem:[%s6 + $0x60] sm:$0xff]
    %v190 = vld [vmem:[%s6 + $0x68] sm:$0xff]
    %v191 = vld [vmem:[%s6 + $0x70] sm:$0xff]
    %v192 = vld [vmem:[%s6 + $0x78] sm:$0xff]
    %v193 = vld [vmem:[%s7] sm:$0x1]
    %v195 = vperm.slane %v193, 0
    %197 = vmatpush.msra.mxu0 %v192
    %198 = vmatpush.msra.mxu0 %v191
    %199 = vmatpush.msra.mxu0 %v190
    %200 = vmatpush.msra.mxu0 %v189
    %201 = vmatpush.msra.mxu0 %v188
    %202 = vmatpush.msra.mxu0 %v187
    %203 = vmatpush.msra.mxu0 %v186
    %204 = vmatpush.msra.mxu0 %v185
    %205 = vmatpush.msra.mxu0 %v184
    %206 = vmatpush.msra.mxu0 %v183
    %207 = vmatpush.msra.mxu0 %v182
    %208 = vmatpush.msra.mxu0 %v181
    %209 = vmatpush.msra.mxu0 %v180
    %210 = vmatpush.msra.mxu0 %v179
    %211 = vmatpush.msra.mxu0 %v178
    %212 = vmatpush.msra.mxu0 %v177
    %213 = vmatmul.f32.gmra.mxu0 %v176
    %v214 = vpop.f32.mrf.mxu0
    %v215 = vadd.f32 %v195, %v214
    %216 = vdwg.mxu0
    %v217 = vadd.f32 %v215, %v146
    %v218 = vsel %vm87, %v217, -inf
    %v219 = vrot.slane %v218, 4
    %v220 = vmax.f32 %v218, %v219
    %v221 = vrot.slane %v220, 2
    %v222 = vmax.f32 %v220, %v221
    %v223 = vrot.slane %v222, 1
    %v224 = vmax.f32 %v222, %v223
    %vm225 = vcmask 1047556
    %v226 = vsel %vm225, %v217, -inf
    %v227 = vrot.slane %v226, 4
    %v228 = vmax.f32 %v226, %v227
    %v229 = vrot.slane %v228, 2
    %v230 = vmax.f32 %v228, %v229
    %v231 = vrot.slane %v230, 1
    %v232 = vmax.f32 %v230, %v231
    %v233 = vsel %vm81, %v224, %v232
    %234 = vst [vmem:[#allocation4] sm:$0x3] %v233
    // Predicated region
    $region30: #{visual_embedding_forward.1} parent=1 // pred_check
      _
    $region31: #{visual_embedding_forward.1} parent=1 // pred_check_branch
      %236 = sbr.rel (0) target = $region33
    $region32: #{visual_embedding_forward.1} parent=1 // pred_region
      %238 = vsyncadd [#allocation5], 0
      %s240 = sshll.u32 [#allocation4], 4
      %s241 = int_to_ptr.vmem [resolvable:$true] %s240
      %s242 = sshll.u32 %s8, 4
      %s243 = int_to_ptr.hbm [resolvable:$true] %s242
      %245 = dma.vmem_to_hbm [thread:$0]  %s241, 32, %s243, [#allocation5]
    $region33: #{visual_embedding_forward.1} parent=1 // pred_fallthru
      _
    // Predicated region
    $region34: #{visual_embedding_forward.1} parent=1 // pred_check
      _
    $region35: #{visual_embedding_forward.1} parent=1 // pred_check_branch
      %247 = sbr.rel (0) target = $region37
    $region36: #{visual_embedding_forward.1} parent=1 // pred_region
      %249 = dma.done [#allocation5], 32
    $region37: #{visual_embedding_forward.1} parent=1 // pred_fallthru
      _
    %250 = vsyncpa [#allocation5], 1

</llo_original>
